<compile_context>
chip_gen: v5e
topology: v5e:2x2
jax: 0.10.0
libtpu: 0.0.40
codegen_flags: <defaults>
</compile_context>

<pallas_src>
import jax
import jax.numpy as jnp
from jax.experimental import pallas as pl
from jax.experimental.pallas import tpu as pltpu

LANE = 128                       # lane (last) dim of a vreg
BLOCK_BYTES = 2 << 20            # ~2 MiB of HBM per input stream per grid step
SMALL_N_THRESHOLD = 1 << 16      # below this, plain XLA fusion wins
VMEM_LIMIT_BYTES = 40 << 20      # 4 streams x 2 bufs x 2 MiB = 16 MiB actual;
                                 # raise scoped limit so v5e (16 MiB default)
                                 # compiles; still < v7x 64 MiB physical.


def _three_ratio_kernel(w_ref, x1_ref, x2_ref, x3_ref, o_ref):
    # w_ref lives in SMEM: three scalar softmax weights (f32).
    w0 = w_ref[0]
    w1 = w_ref[1]
    w2 = w_ref[2]
    # Cast to f32 on vregs (free for f32 inputs), weighted sum on the VPU,
    # write back in the output's native dtype.  Intentionally not
    # micro-optimized: DMA is the bottleneck, not VALU slots.
    a = x1_ref[...].astype(jnp.float32)
    b = x2_ref[...].astype(jnp.float32)
    c = x3_ref[...].astype(jnp.float32)
    o_ref[...] = (a * w0 + b * w1 + c * w2).astype(o_ref.dtype)


def _xla_fallback(x1, x2, x3, w, out_dtype):
    # Fused XLA elementwise path: already at the HBM roofline and avoids any
    # pad / slice copies for ragged or tiny sizes.
    out = (x1.astype(jnp.float32) * w[0]
           + x2.astype(jnp.float32) * w[1]
           + x3.astype(jnp.float32) * w[2])
    return out.astype(out_dtype)


def three_ratio_forward(x1, x2, x3, ratio, *, use_pallas=None):
    """Pallas equivalent of Three_Ratio.forward(x1, x2, x3)."""
    # Parameter glue (3-element softmax of the learnable ratio) in plain JAX.
    w = jax.nn.softmax(ratio.astype(jnp.float32), axis=-1)

    orig_shape = x1.shape
    out_dtype = x1.dtype  # TODO(synk): mixed-dtype x1/x2/x3 promotion follows x1.
    n = x1.size
    lane_aligned = (n % LANE == 0)

    if use_pallas is None:
        use_pallas = lane_aligned and n >= SMALL_N_THRESHOLD
    if not use_pallas or not lane_aligned:
        # Ragged n would require pad + slice copies (~3x HBM traffic) to use
        # the 2-D kernel, so XLA fusion is strictly better there.
        return _xla_fallback(x1, x2, x3, w, out_dtype)

    # Free contiguous reshape to a flat (rows, 128) slab in the native dtype.
    rows = n // LANE
    a2 = x1.reshape(rows, LANE)
    b2 = x2.reshape(rows, LANE)
    c2 = x3.reshape(rows, LANE)

    # Dtype-aware block sizing: ~BLOCK_BYTES of HBM per stream per step,
    # rounded down to the sublane-packing multiple (f32:8, bf16:16, int8:32).
    itemsize = jnp.dtype(out_dtype).itemsize
    sublane_mult = max(8, 32 // itemsize)
    cand_rows = BLOCK_BYTES // (LANE * itemsize)
    cand_rows = max(sublane_mult, (cand_rows // sublane_mult) * sublane_mult)
    # Full-extent block when the whole array fits in one block (always legal);
    # otherwise a big aligned block, with the ragged last block masked by Pallas.
    block_rows = rows if rows <= cand_rows else cand_rows
    grid = (pl.cdiv(rows, block_rows),)

    cost = pl.CostEstimate(
        flops=5 * n,                       # 3 mul + 2 add per element
        transcendentals=0,
        bytes_accessed=4 * n * itemsize,   # 3 reads + 1 write
    )

    out2d = pl.pallas_call(
        _three_ratio_kernel,
        out_shape=jax.ShapeDtypeStruct((rows, LANE), out_dtype),
        grid=grid,
        in_specs=[
            pl.BlockSpec(memory_space=pltpu.MemorySpace.SMEM),    # weights (3,)
            pl.BlockSpec((block_rows, LANE), lambda i: (i, 0)),   # x1 tile
            pl.BlockSpec((block_rows, LANE), lambda i: (i, 0)),   # x2 tile
            pl.BlockSpec((block_rows, LANE), lambda i: (i, 0)),   # x3 tile
        ],
        out_specs=pl.BlockSpec((block_rows, LANE), lambda i: (i, 0)),
        compiler_params=pltpu.CompilerParams(
            dimension_semantics=("parallel",),
            vmem_limit_bytes=VMEM_LIMIT_BYTES,
        ),
        cost_estimate=cost,
    )(w, a2, b2, c2)

    return out2d.reshape(orig_shape)


if __name__ == "__main__":
    key = jax.random.PRNGKey(0)
    k1, k2, k3 = jax.random.split(key, 3)

    # Small shapes consistent with an NCHW feature map.
    shape = (2, 4, 16, 16)
    x1 = jax.random.normal(k1, shape, dtype=jnp.float32)
    x2 = jax.random.normal(k2, shape, dtype=jnp.float32)
    x3 = jax.random.normal(k3, shape, dtype=jnp.float32)

    # Deterministic parameter init, matching nn.Parameter(torch.tensor([0., 0., 0.]))
    ratio = jnp.zeros((3,), dtype=jnp.float32)

    # Force the Pallas path so the kernel is actually exercised at this
    # (deliberately tiny, lane-aligned) demo size.
    out = three_ratio_forward(x1, x2, x3, ratio, use_pallas=True)
    out = jax.block_until_ready(out)

    # Reference check against plain JAX.
    w_ref = jax.nn.softmax(ratio, axis=-1)
    ref = x1 * w_ref[0] + x2 * w_ref[1] + x3 * w_ref[2]
    assert out.shape == shape and out.dtype == jnp.float32
    assert jnp.allclose(out, ref, atol=1e-6, rtol=1e-6)

    print("KERNEL_OK")
</pallas_src>

<mosaic_0001>
module attributes {stable_mosaic.version = 11 : i64} {
  func.func @_three_ratio_kernel(%arg0: i32, %arg1: memref<3xf32, #tpu.memory_space<smem>>, %arg2: memref<16x128xf32, #tpu.memory_space<vmem>>, %arg3: memref<16x128xf32, #tpu.memory_space<vmem>>, %arg4: memref<16x128xf32, #tpu.memory_space<vmem>>, %arg5: memref<16x128xf32, #tpu.memory_space<vmem>>) attributes {dimension_semantics = [#tpu.dimension_semantics<parallel>], iteration_bounds = array<i64: 1>, scalar_prefetch = 0 : i64, scratch_operands = 0 : i64, tpu.core_type = #tpu.core_type<tc>, window_params = [{transform_indices = @transform_0, window_bounds = array<i64: 3>}, {transform_indices = @transform_1, window_bounds = array<i64: 16, 128>}, {transform_indices = @transform_2, window_bounds = array<i64: 16, 128>}, {transform_indices = @transform_3, window_bounds = array<i64: 16, 128>}, {transform_indices = @transform_4, window_bounds = array<i64: 16, 128>}]} {
    %c0 = arith.constant 0 : index
    %0 = memref.load %arg1[%c0] : memref<3xf32, #tpu.memory_space<smem>>
    %c1 = arith.constant 1 : index
    %1 = memref.load %arg1[%c1] : memref<3xf32, #tpu.memory_space<smem>>
    %c2 = arith.constant 2 : index
    %2 = memref.load %arg1[%c2] : memref<3xf32, #tpu.memory_space<smem>>
    %c0_0 = arith.constant 0 : index
    %c0_1 = arith.constant 0 : index
    %3 = vector.load %arg2[%c0_0, %c0_1] : memref<16x128xf32, #tpu.memory_space<vmem>>, vector<16x128xf32>
    %c0_2 = arith.constant 0 : index
    %c0_3 = arith.constant 0 : index
    %4 = vector.load %arg3[%c0_2, %c0_3] : memref<16x128xf32, #tpu.memory_space<vmem>>, vector<16x128xf32>
    %c0_4 = arith.constant 0 : index
    %c0_5 = arith.constant 0 : index
    %5 = vector.load %arg4[%c0_4, %c0_5] : memref<16x128xf32, #tpu.memory_space<vmem>>, vector<16x128xf32>
    %6 = vector.broadcast %0 : f32 to vector<16x128xf32>
    %7 = arith.mulf %3, %6 : vector<16x128xf32>
    %8 = vector.broadcast %1 : f32 to vector<16x128xf32>
    %9 = arith.mulf %4, %8 : vector<16x128xf32>
    %10 = arith.addf %7, %9 : vector<16x128xf32>
    %11 = vector.broadcast %2 : f32 to vector<16x128xf32>
    %12 = arith.mulf %5, %11 : vector<16x128xf32>
    %13 = arith.addf %10, %12 : vector<16x128xf32>
    %c0_6 = arith.constant 0 : index
    %c0_7 = arith.constant 0 : index
    %14 = vector.load %arg5[%c0_6, %c0_7] : memref<16x128xf32, #tpu.memory_space<vmem>>, vector<16x128xf32>
    tpu.vector_store %arg5[%c0_6, %c0_7], %13 {strides = array<i32>} : memref<16x128xf32, #tpu.memory_space<vmem>>, vector<16x128xf32>,
    return
  }
  func.func @transform_0(%arg0: i32) -> i32 {
    %c0_i32 = arith.constant 0 : i32
    %c0_i32_0 = arith.constant 0 : i32
    return %c0_i32 : i32
  }
  func.func @transform_1(%arg0: i32) -> (i32, i32) {
    %c0_i32 = arith.constant 0 : i32
    %c0_i32_0 = arith.constant 0 : i32
    return %arg0, %c0_i32 : i32, i32
  }
  func.func @transform_2(%arg0: i32) -> (i32, i32) {
    %c0_i32 = arith.constant 0 : i32
    %c0_i32_0 = arith.constant 0 : i32
    return %arg0, %c0_i32 : i32, i32
  }
  func.func @transform_3(%arg0: i32) -> (i32, i32) {
    %c0_i32 = arith.constant 0 : i32
    %c0_i32_0 = arith.constant 0 : i32
    return %arg0, %c0_i32 : i32, i32
  }
  func.func @transform_4(%arg0: i32) -> (i32, i32) {
    %c0_i32 = arith.constant 0 : i32
    %c0_i32_0 = arith.constant 0 : i32
    return %arg0, %c0_i32 : i32, i32
  }
}

</mosaic_0001>

<llo_original>
// kernel: tpu_custom_call.1
$region0: #{tpu_custom_call.1}
  #allocation0 [shape = 'u32[]', space=smem, size = 0x4, offset = 0x4, fixed_abs, tag = 'smem constant byte address 0x4 - core index']
  #allocation1 [shape = 'u32[72,128]{1,0:T(1,128)}', space=vmem, size = 0x9000, scoped, tag = 'internal scratch']
  %s0 = inlined_call_operand.hbm [shape: f32[3], index: 0, kind: input, shape index: {}]
  %s1 = inlined_call_operand.hbm [shape: f32[16,128], index: 1, kind: input, shape index: {}]
  %s2 = inlined_call_operand.hbm [shape: f32[16,128], index: 2, kind: input, shape index: {}]
  %s3 = inlined_call_operand.hbm [shape: f32[16,128], index: 3, kind: input, shape index: {}]
  %s4 = inlined_call_operand.hbm [shape: f32[16,128], index: 4, kind: output, shape index: {}]
  %s5 = sld [smem:[#allocation0]]
  $region42: #{tpu_custom_call.1} parent=0
    _
  %s7 = ssub.s32 1, %s5
  %s8 = scalar_select 0, %s7, %s5
  $region1: #{tpu_custom_call.1} parent=0
    #allocation2 [shape = 'u8[512]{0}', space=smem, size = 0x200, scoped, tag = 'input window, operand 0, single buffered']
    #allocation3 [shape = 's32[1]{0}', space=sflag, size = 0x4, scoped, tag = 'scoped memory for tpu_custom_call.1']
    #allocation4 [shape = 's32[1]{0}', space=sflag, size = 0x4, scoped, tag = 'scoped memory for tpu_custom_call.1']
    #allocation5 [shape = 's32[1]{0}', space=sflag, size = 0x4, scoped, tag = 'scoped memory for tpu_custom_call.1']
    #allocation6 [shape = 'u8[8192]{0}', space=vmem, size = 0x2000, scoped, tag = 'input window, operand 1, single buffered']
    #allocation7 [shape = 'u8[8192]{0}', space=vmem, size = 0x2000, scoped, tag = 'input window, operand 2, single buffered']
    #allocation8 [shape = 's32[1]{0}', space=sflag, size = 0x4, scoped, tag = 'scoped memory for tpu_custom_call.1']
    #allocation9 [shape = 'u8[8192]{0}', space=vmem, size = 0x2000, scoped, tag = 'input window, operand 3, single buffered']
    #allocation10 [shape = 'u8[8192]{0}', space=vmem, size = 0x2000, scoped, tag = 'output window, operand 0, single buffered']
    %9 = vsyncpa [#allocation5], 0
    %10 = vsyncpa [#allocation3], 0
    %11 = vsyncpa [#allocation8], 0
    %12 = vsyncpa [#allocation4], 0
    // Predicated region
    $region2: #{tpu_custom_call.1} parent=1 // pred_check
      _
    $region3: #{tpu_custom_call.1} parent=1 // pred_check_branch
      %14 = sbr.rel (0) target = $region5
    $region4: #{tpu_custom_call.1} parent=1 // pred_region
      %16 = vsyncadd [#allocation5], 0
      %s18 = sshll.u32 %s0, 4
      %s19 = int_to_ptr.hbm [resolvable:$true] %s18
      %21 = dma.hbm_to_smem %s19, 16, [#allocation2], [#allocation5]
    $region5: #{tpu_custom_call.1} parent=1 // pred_fallthru
      _
    // Predicated region
    $region6: #{tpu_custom_call.1} parent=1 // pred_check
      _
    $region7: #{tpu_custom_call.1} parent=1 // pred_check_branch
      %23 = sbr.rel (0) target = $region9
    $region8: #{tpu_custom_call.1} parent=1 // pred_region
      %25 = vsyncadd [#allocation3], 0
      %s26 = sshll.u32 %s1, 4
      %s27 = int_to_ptr.hbm [resolvable:$true] %s26
      %s28 = sshll.u32 [#allocation6], 4
      %s29 = int_to_ptr.vmem [resolvable:$true] %s28
      %34 = dma.hbm_to_vmem [thread:$0]  %s27, 256, %s29, [#allocation3], 128, 128, 8
    $region9: #{tpu_custom_call.1} parent=1 // pred_fallthru
      _
    // Predicated region
    $region10: #{tpu_custom_call.1} parent=1 // pred_check
      _
    $region11: #{tpu_custom_call.1} parent=1 // pred_check_branch
      %36 = sbr.rel (0) target = $region13
    $region12: #{tpu_custom_call.1} parent=1 // pred_region
      %38 = vsyncadd [#allocation8], 0
      %s39 = sshll.u32 %s2, 4
      %s40 = int_to_ptr.hbm [resolvable:$true] %s39
      %s41 = sshll.u32 [#allocation7], 4
      %s42 = int_to_ptr.vmem [resolvable:$true] %s41
      %47 = dma.hbm_to_vmem [thread:$0]  %s40, 256, %s42, [#allocation8], 128, 128, 8
    $region13: #{tpu_custom_call.1} parent=1 // pred_fallthru
      _
    // Predicated region
    $region14: #{tpu_custom_call.1} parent=1 // pred_check
      _
    $region15: #{tpu_custom_call.1} parent=1 // pred_check_branch
      %49 = sbr.rel (0) target = $region17
    $region16: #{tpu_custom_call.1} parent=1 // pred_region
      %51 = vsyncadd [#allocation8], 0
      %s52 = sshll.u32 %s3, 4
      %s53 = int_to_ptr.hbm [resolvable:$true] %s52
      %s54 = sshll.u32 [#allocation9], 4
      %s55 = int_to_ptr.vmem [resolvable:$true] %s54
      %60 = dma.hbm_to_vmem [thread:$0]  %s53, 256, %s55, [#allocation8], 128, 128, 8
    $region17: #{tpu_custom_call.1} parent=1 // pred_fallthru
      _
    // Predicated region
    $region18: #{tpu_custom_call.1} parent=1 // pred_check
      _
    $region19: #{tpu_custom_call.1} parent=1 // pred_check_branch
      %62 = sbr.rel (0) target = $region21
    $region20: #{tpu_custom_call.1} parent=1 // pred_region
      %64 = dma.done [#allocation5], 16
    $region21: #{tpu_custom_call.1} parent=1 // pred_fallthru
      _
    // Predicated region
    $region22: #{tpu_custom_call.1} parent=1 // pred_check
      _
    $region23: #{tpu_custom_call.1} parent=1 // pred_check_branch
      %66 = sbr.rel (0) target = $region25
    $region24: #{tpu_custom_call.1} parent=1 // pred_region
      %68 = dma.done [#allocation3], 256
    $region25: #{tpu_custom_call.1} parent=1 // pred_fallthru
      _
    // Predicated region
    $region26: #{tpu_custom_call.1} parent=1 // pred_check
      _
    $region27: #{tpu_custom_call.1} parent=1 // pred_check_branch
      %70 = sbr.rel (0) target = $region29
    $region28: #{tpu_custom_call.1} parent=1 // pred_region
      %72 = dma.done [#allocation8], 256
    $region29: #{tpu_custom_call.1} parent=1 // pred_fallthru
      _
    // Predicated region
    $region30: #{tpu_custom_call.1} parent=1 // pred_check
      _
    $region31: #{tpu_custom_call.1} parent=1 // pred_check_branch
      %74 = sbr.rel (0) target = $region33
    $region32: #{tpu_custom_call.1} parent=1 // pred_region
      %76 = dma.done [#allocation8], 256
    $region33: #{tpu_custom_call.1} parent=1 // pred_fallthru
      _
    %77 = sfence
    %s78 = sld [smem:[#allocation2]]
    %s79 = sld [smem:[#allocation2 + $0x1]]
    %s80 = sld [smem:[#allocation2 + $0x2]]
    %v81 = vld [vmem:[#allocation6] sm:$0xff]
    %v82 = vld [vmem:[#allocation6 + $0x8] sm:$0xff]
    %v83 = vld [vmem:[#allocation7] sm:$0xff]
    %v84 = vld [vmem:[#allocation7 + $0x8] sm:$0xff]
    %v85 = vld [vmem:[#allocation9] sm:$0xff]
    %v86 = vld [vmem:[#allocation9 + $0x8] sm:$0xff]
    %v87 = vstv %s78
    %v88 = vmul.f32 %v81, %v87
    %v89 = vmul.f32 %v82, %v87
    %v90 = vstv %s79
    %v91 = vmul.f32 %v83, %v90
    %v92 = vmul.f32 %v84, %v90
    %v93 = vadd.f32 %v88, %v91
    %v94 = vadd.f32 %v89, %v92
    %v95 = vstv %s80
    %v96 = vmul.f32 %v85, %v95
    %v97 = vmul.f32 %v86, %v95
    %v98 = vadd.f32 %v93, %v96
    %v99 = vadd.f32 %v94, %v97
    %100 = vst [vmem:[#allocation10] sm:$0xff] %v98
    %101 = vst [vmem:[#allocation10 + $0x8] sm:$0xff] %v99
    // Predicated region
    $region34: #{tpu_custom_call.1} parent=1 // pred_check
      _
    $region35: #{tpu_custom_call.1} parent=1 // pred_check_branch
      %103 = sbr.rel (0) target = $region37
    $region36: #{tpu_custom_call.1} parent=1 // pred_region
      %105 = vsyncadd [#allocation4], 0
      %s106 = sshll.u32 [#allocation10], 4
      %s107 = int_to_ptr.vmem [resolvable:$true] %s106
      %s108 = sshll.u32 %s4, 4
      %s109 = int_to_ptr.hbm [resolvable:$true] %s108
      %114 = dma.vmem_to_hbm [thread:$0]  %s107, 256, %s109, [#allocation4], 128, 128, 8
    $region37: #{tpu_custom_call.1} parent=1 // pred_fallthru
      _
    // Predicated region
    $region38: #{tpu_custom_call.1} parent=1 // pred_check
      _
    $region39: #{tpu_custom_call.1} parent=1 // pred_check_branch
      %116 = sbr.rel (0) target = $region41
    $region40: #{tpu_custom_call.1} parent=1 // pred_region
      %118 = dma.done [#allocation4], 256
    $region41: #{tpu_custom_call.1} parent=1 // pred_fallthru
      _
    %119 = vsyncpa [#allocation3], 1
    %120 = vsyncpa [#allocation8], 1
    %121 = vsyncpa [#allocation4], 1
    %122 = vsyncpa [#allocation5], 1

</llo_original>
